<compile_context>
chip_gen: v7x
topology: tpu7x:2x2x1
jax: 0.10.0
libtpu: 0.0.40
codegen_flags: <defaults>
</compile_context>

<pallas_src>
import math

import jax
import jax.numpy as jnp
from jax.experimental import pallas as pl
from jax.experimental.pallas import tpu as pltpu


def _bce_kernel(x_ref, t_ref, o_ref, acc_ref):
    """Per-tile BCE partial sums, accumulated into an (8, 128) vector.

    Matches torch.nn.BCELoss (reduction='mean') numerics:
      loss = -( t*log(x) + (1-t)*log(1-x) ),  log terms clamped at -100.
    """
    i = pl.program_id(1)  # reduction ("arbitrary") axis

    @pl.when(i == 0)
    def _init():
        acc_ref[...] = jnp.zeros_like(acc_ref)

    x = x_ref[...].astype(jnp.float32)
    t = t_ref[...].astype(jnp.float32)

    # PyTorch BCELoss clamps the log terms at -100 for numerical stability.
    log_x = jnp.maximum(jnp.log(x), -100.0)
    log_1mx = jnp.maximum(jnp.log(1.0 - x), -100.0)
    # -(t*log_x + (1-t)*log_1mx) == -(log_1mx + t*(log_x - log_1mx))
    loss = -(log_1mx + t * (log_x - log_1mx))

    # Pure-VPU accumulation: fold the (tile_rows, 128) tile into (8, 128).
    acc_ref[...] += loss.reshape(-1, 8, loss.shape[-1]).sum(axis=0)

    @pl.when(i == pl.num_programs(1) - 1)
    def _finalize():
        o_ref[0] = acc_ref[...]


def _round_up(x, m):
    return ((x + m - 1) // m) * m


def edge_segmentation_loss_bce(inputs, targets, *, tile_rows=2048, lanes=128,
                               num_cores=2):
    """BCE-mean loss over (any-shaped) probability maps via a Pallas reduction."""
    assert inputs.shape == targets.shape

    total = math.prod(inputs.shape)
    assert total > 0

    tile_rows = max(8, _round_up(tile_rows, 8))

    rows = -(-total // lanes)                      # cdiv
    rows_per_core = -(-rows // num_cores)
    tr = min(tile_rows, _round_up(rows_per_core, 8))
    tiles_per_core = -(-rows_per_core // tr)
    padded_rows = num_cores * tiles_per_core * tr
    padded_total = padded_rows * lanes

    x_flat = inputs.reshape(-1)
    t_flat = targets.reshape(-1)
    pad = padded_total - total
    if pad:
        # Pad with x = 1, t = 1:  -(t*log(1) + (1-t)*clamp(log(0))) == 0 exactly,
        # so padding contributes nothing to the partial sums.
        x_flat = jnp.concatenate([x_flat, jnp.ones((pad,), dtype=x_flat.dtype)])
        t_flat = jnp.concatenate([t_flat, jnp.ones((pad,), dtype=t_flat.dtype)])

    x2 = x_flat.reshape(padded_rows, lanes)
    t2 = t_flat.reshape(padded_rows, lanes)

    def in_index_map(c, i):
        return (c * tiles_per_core + i, 0)

    def out_index_map(c, i):
        return (c, 0, 0)

    partials = pl.pallas_call(
        _bce_kernel,
        out_shape=jax.ShapeDtypeStruct((num_cores, 8, lanes), jnp.float32),
        grid_spec=pltpu.PrefetchScalarGridSpec(
            num_scalar_prefetch=0,
            grid=(num_cores, tiles_per_core),
            in_specs=[
                pl.BlockSpec((tr, lanes), in_index_map),
                pl.BlockSpec((tr, lanes), in_index_map),
            ],
            out_specs=pl.BlockSpec((1, 8, lanes), out_index_map),
            scratch_shapes=[pltpu.VMEM((8, lanes), jnp.float32)],
        ),
        compiler_params=pltpu.CompilerParams(
            dimension_semantics=("parallel", "arbitrary"),
        ),
    )(x2, t2)

    # Tiny final cross-lane reduce (2 x 8 x 128 elems) + mean over the TRUE count.
    return jnp.sum(partials) / jnp.float32(total)


def _reference_bce(inputs, targets):
    x = inputs.astype(jnp.float32)
    t = targets.astype(jnp.float32)
    log_x = jnp.maximum(jnp.log(x), -100.0)
    log_1mx = jnp.maximum(jnp.log(1.0 - x), -100.0)
    return jnp.mean(-(t * log_x + (1.0 - t) * log_1mx))


# TODO(synk): composite / IoU / Dice branches of the module are dead under the
# default constructor flags (bce=True) and are not implemented here.

if __name__ == "__main__":
    key = jax.random.PRNGKey(0)
    k1, k2, k3, k4 = jax.random.split(key, 4)

    # Main demo shape: NCHW, total = 2048 elements (exactly divisible by 128).
    N, C, H, W = 2, 4, 16, 16
    inputs = jax.nn.sigmoid(jax.random.normal(k1, (N, C, H, W), dtype=jnp.float32))
    targets = jax.random.uniform(k2, (N, C, H, W), dtype=jnp.float32)

    loss = edge_segmentation_loss_bce(inputs, targets)
    loss = jax.block_until_ready(loss)
    ref = _reference_bce(inputs, targets)
    assert jnp.allclose(loss, ref, rtol=1e-5, atol=1e-6), (loss, ref)

    # Ragged shape (total not a multiple of 128) exercises the padding path.
    inputs2 = jax.nn.sigmoid(jax.random.normal(k3, (2, 3, 15, 17), dtype=jnp.float32))
    targets2 = jax.random.uniform(k4, (2, 3, 15, 17), dtype=jnp.float32)

    loss2 = edge_segmentation_loss_bce(inputs2, targets2)
    loss2 = jax.block_until_ready(loss2)
    ref2 = _reference_bce(inputs2, targets2)
    assert jnp.allclose(loss2, ref2, rtol=1e-5, atol=1e-6), (loss2, ref2)

    print("KERNEL_OK")
</pallas_src>

<mosaic_0001>
module attributes {stable_mosaic.version = 11 : i64} {
  func.func @_bce_kernel(%arg0: i32, %arg1: i32, %arg2: memref<8x128xf32, #tpu.memory_space<vmem>>, %arg3: memref<8x128xf32, #tpu.memory_space<vmem>>, %arg4: memref<1x8x128xf32, #tpu.memory_space<vmem>>, %arg5: memref<8x128xf32, #tpu.memory_space<vmem>>) attributes {dimension_semantics = [#tpu.dimension_semantics<parallel>, #tpu.dimension_semantics<arbitrary>], iteration_bounds = array<i64: 2, 1>, scalar_prefetch = 0 : i64, scratch_operands = 1 : i64, tpu.core_type = #tpu.core_type<tc>, window_params = [{transform_indices = @transform_0, window_bounds = array<i64: 8, 128>}, {transform_indices = @transform_1, window_bounds = array<i64: 8, 128>}, {transform_indices = @transform_2, window_bounds = array<i64: 1, 8, 128>}]} {
    %c0_i32 = arith.constant 0 : i32
    %0 = arith.cmpi eq, %arg1, %c0_i32 : i32
    %1 = arith.extui %0 : i1 to i32
    %c0_i32_0 = arith.constant 0 : i32
    %2 = arith.cmpi ne, %1, %c0_i32_0 : i32
    scf.if %2 {
      %cst_14 = arith.constant 0.000000e+00 : f32
      %26 = vector.broadcast %cst_14 : f32 to vector<8x128xf32>
      %c0_15 = arith.constant 0 : index
      %c0_16 = arith.constant 0 : index
      %27 = vector.load %arg5[%c0_15, %c0_16] : memref<8x128xf32, #tpu.memory_space<vmem>>, vector<8x128xf32>
      tpu.vector_store %arg5[%c0_15, %c0_16], %26 {strides = array<i32>} : memref<8x128xf32, #tpu.memory_space<vmem>>, vector<8x128xf32>,
    } else {
    }
    %c0 = arith.constant 0 : index
    %c0_1 = arith.constant 0 : index
    %3 = vector.load %arg2[%c0, %c0_1] : memref<8x128xf32, #tpu.memory_space<vmem>>, vector<8x128xf32>
    %c0_2 = arith.constant 0 : index
    %c0_3 = arith.constant 0 : index
    %4 = vector.load %arg3[%c0_2, %c0_3] : memref<8x128xf32, #tpu.memory_space<vmem>>, vector<8x128xf32>
    %5 = math.log %3 : vector<8x128xf32>
    %cst = arith.constant -1.000000e+02 : f32
    %6 = vector.broadcast %cst : f32 to vector<8x128xf32>
    %7 = arith.maximumf %5, %6 : vector<8x128xf32>
    %cst_4 = arith.constant 1.000000e+00 : f32
    %8 = vector.broadcast %cst_4 : f32 to vector<8x128xf32>
    %9 = arith.subf %8, %3 : vector<8x128xf32>
    %10 = math.log %9 : vector<8x128xf32>
    %cst_5 = arith.constant -1.000000e+02 : f32
    %11 = vector.broadcast %cst_5 : f32 to vector<8x128xf32>
    %12 = arith.maximumf %10, %11 : vector<8x128xf32>
    %13 = arith.subf %7, %12 : vector<8x128xf32>
    %14 = arith.mulf %4, %13 : vector<8x128xf32>
    %15 = arith.addf %12, %14 : vector<8x128xf32>
    %cst_6 = arith.constant 0.000000e+00 : f32
    %16 = vector.broadcast %cst_6 : f32 to vector<8x128xf32>
    %17 = arith.subf %16, %15 : vector<8x128xf32>
    %c0_7 = arith.constant 0 : index
    %c0_8 = arith.constant 0 : index
    %18 = vector.load %arg5[%c0_7, %c0_8] : memref<8x128xf32, #tpu.memory_space<vmem>>, vector<8x128xf32>
    %19 = vector.shape_cast %17 : vector<8x128xf32> to vector<1x8x128xf32>
    %cst_9 = arith.constant dense<0.000000e+00> : vector<8x128xf32>
    %20 = vector.multi_reduction <add>, %19, %cst_9 [0] : vector<1x8x128xf32> to vector<8x128xf32>
    %21 = arith.addf %18, %20 : vector<8x128xf32>
    %c0_10 = arith.constant 0 : index
    %c0_11 = arith.constant 0 : index
    %22 = vector.load %arg5[%c0_10, %c0_11] : memref<8x128xf32, #tpu.memory_space<vmem>>, vector<8x128xf32>
    tpu.vector_store %arg5[%c0_10, %c0_11], %21 {strides = array<i32>} : memref<8x128xf32, #tpu.memory_space<vmem>>, vector<8x128xf32>,
    %c0_i32_12 = arith.constant 0 : i32
    %23 = arith.cmpi eq, %arg1, %c0_i32_12 : i32
    %24 = arith.extui %23 : i1 to i32
    %c0_i32_13 = arith.constant 0 : i32
    %25 = arith.cmpi ne, %24, %c0_i32_13 : i32
    scf.if %25 {
      %c0_14 = arith.constant 0 : index
      %c0_15 = arith.constant 0 : index
      %26 = vector.load %arg5[%c0_14, %c0_15] : memref<8x128xf32, #tpu.memory_space<vmem>>, vector<8x128xf32>
      %c0_16 = arith.constant 0 : index
      %c0_17 = arith.constant 0 : index
      %c0_18 = arith.constant 0 : index
      %27 = vector.load %arg4[%c0_16, %c0_17, %c0_18] : memref<1x8x128xf32, #tpu.memory_space<vmem>>, vector<1x8x128xf32>
      %28 = vector.shape_cast %27 : vector<1x8x128xf32> to vector<8x128xf32>
      %29 = vector.shape_cast %26 : vector<8x128xf32> to vector<1x8x128xf32>
      tpu.vector_store %arg4[%c0_16, %c0_17, %c0_18], %29 {strides = array<i32>} : memref<1x8x128xf32, #tpu.memory_space<vmem>>, vector<1x8x128xf32>,
    } else {
    }
    return
  }
  func.func @transform_0(%arg0: i32, %arg1: i32) -> (i32, i32) {
    %c1_i32 = arith.constant 1 : i32
    %0 = arith.muli %arg0, %c1_i32 : i32
    %1 = arith.addi %0, %arg1 : i32
    %c0_i32 = arith.constant 0 : i32
    %c0_i32_0 = arith.constant 0 : i32
    return %1, %c0_i32 : i32, i32
  }
  func.func @transform_1(%arg0: i32, %arg1: i32) -> (i32, i32) {
    %c1_i32 = arith.constant 1 : i32
    %0 = arith.muli %arg0, %c1_i32 : i32
    %1 = arith.addi %0, %arg1 : i32
    %c0_i32 = arith.constant 0 : i32
    %c0_i32_0 = arith.constant 0 : i32
    return %1, %c0_i32 : i32, i32
  }
  func.func @transform_2(%arg0: i32, %arg1: i32) -> (i32, i32, i32) {
    %c0_i32 = arith.constant 0 : i32
    %c0_i32_0 = arith.constant 0 : i32
    %c0_i32_1 = arith.constant 0 : i32
    return %arg0, %c0_i32, %c0_i32_0 : i32, i32, i32
  }
}

</mosaic_0001>

<llo_original>
// kernel: tpu_custom_call.1
$region0: #{tpu_custom_call.1}
  #allocation0 [shape = 'u32[]', space=smem, size = 0x4, offset = 0x4, fixed_abs, tag = 'smem constant byte address 0x4 - core index']
  #allocation1 [shape = 'u32[144,128]{1,0:T(1,128)}', space=vmem, size = 0x12000, scoped, tag = 'internal scratch']
  #allocation2 [shape = 'f32[8,128]{1,0:T(8,128)}', space=vmem, size = 0x1000, scoped, tag = 'scratch operand']
  %s0 = inlined_call_operand.hbm [shape: f32[16,128], index: 0, kind: input, shape index: {}]
  %s1 = inlined_call_operand.hbm [shape: f32[16,128], index: 1, kind: input, shape index: {}]
  %s2 = inlined_call_operand.hbm [shape: f32[2,8,128], index: 2, kind: output, shape index: {}]
  %s3 = sld [smem:[#allocation0]]
  $region57: #{tpu_custom_call.1} parent=0
    _
  %s5 = ssub.s32 1, %s3
  %s6 = scalar_select 0, %s5, %s3
  $region1: #{tpu_custom_call.1} parent=0
    #allocation3 [shape = 'u8[8192]{0}', space=vmem, size = 0x2000, scoped, tag = 'input window, operand 0']
    #allocation4 [shape = 's32[2]{0}', space=sflag, size = 0x8, scoped, tag = 'scoped memory for tpu_custom_call.1']
    #allocation5 [shape = 's32[2]{0}', space=sflag, size = 0x8, scoped, tag = 'scoped memory for tpu_custom_call.1']
    #allocation6 [shape = 'u8[8192]{0}', space=vmem, size = 0x2000, scoped, tag = 'input window, operand 1']
    #allocation7 [shape = 's32[2]{0}', space=sflag, size = 0x8, scoped, tag = 'scoped memory for tpu_custom_call.1']
    #allocation8 [shape = 'u8[8192]{0}', space=vmem, size = 0x2000, scoped, tag = 'output window, operand 0']
    %7 = vsyncpa [#allocation4], 0
    %s8 = scalar_lea.sflag [#allocation4], 1
    %9 = vsyncpa %s8, 0
    %10 = vsyncpa [#allocation7], 0
    %s11 = scalar_lea.sflag [#allocation7], 1
    %12 = vsyncpa %s11, 0
    %13 = vsyncpa [#allocation5], 0
    %s14 = scalar_lea.sflag [#allocation5], 1
    %15 = vsyncpa %s14, 0
    loop: start=0, step=1, limit=4
    $region2: #{tpu_custom_call.1} parent=1 // loop_pre_header
      _
    $region3: #{tpu_custom_call.1} parent=1 // loop_header
      %s17 = sphi 0, %s21
      %p18 = scmp.ge.s32.totalorder %s17, 4
      %s24 = sphi 0, %s36
      %s25 = sphi 0, %s32
      %s26 = sphi 0, %s24
      %s27 = sphi 0, %s25
      %s28 = sphi 0, %s26
      %s29 = sphi 0, %s27
      %s41 = sphi 0, %s43
      %s44 = sphi 0, %s41
      %s45 = sphi 0, %s44
      %s61 = sphi 0, %s45
      %s69 = sphi 0, %s71
      %s72 = sphi 0, %s69
      %s73 = sphi 0, %s72
      %s89 = sphi 0, %s73
      %s95 = sphi 0, %s97
      %s98 = sphi 0, %s95
      %s99 = sphi 0, %s98
      %s115 = sphi 0, %s99
    $region4: #{tpu_custom_call.1} parent=1 // loop_header_branch
      %20 = sbr.rel (%p18) target = $region8
    $region5: #{tpu_custom_call.1} parent=1 // loop_body
      %s22 = ssub.s32 %s17, 1
      %s23 = ssub.s32 %s17, 2
      %s30 = sadd.s32 1, %s25
      %p31 = scmp.ge.s32.totalorder %s30, 1
      %s32 = scalar_select %p31, 0, %s30
      %s33 = sadd.s32 1, %s24
      %s34 = scalar_select %p31, %s33, %s24
      %p35 = scmp.ge.s32.totalorder %s34, 2
      %s36 = scalar_select %p35, 0, %s34
      %s37 = sadd.s32 %s24, %s25
      %s38 = sadd.s32 %s36, %s32
      %s39 = ssub.s32 %s37, %s38
      %p40 = scmp.eq.s32.totalorder %s39, 0
      %s42 = sadd.s32 %s41, 1
      %s43 = scalar_select %p40, %s41, %s42
      %p46 = pneg %p40
      %p47 = scmp.eq.s32.totalorder %s17, 1
      %p48 = por %p46, %p47
      %p49 = scmp.ne.s32.totalorder %s41, %s44
      %p50 = scmp.eq.s32.totalorder %s17, 0
      %p51 = por %p49, %p50
      %p52 = scmp.ne.s32.totalorder %s41, %s44
      %p53 = scmp.eq.s32.totalorder %s22, 1
      %p54 = por %p52, %p53
      %p55 = scmp.ne.s32.totalorder %s44, %s45
      %p56 = scmp.eq.s32.totalorder %s22, 0
      %p57 = por %p55, %p56
      %p58 = scmp.ne.s32.totalorder %s44, %s45
      %p59 = scmp.eq.s32.totalorder %s23, 1
      %p60 = por %p58, %p59
      %p62 = scmp.ne.s32.totalorder %s45, %s61
      %p63 = scmp.eq.s32.totalorder %s23, 0
      %p64 = por %p62, %p63
      %s65 = sadd.s32 %s24, %s25
      %s66 = sadd.s32 %s36, %s32
      %s67 = ssub.s32 %s65, %s66
      %p68 = scmp.eq.s32.totalorder %s67, 0
      %s70 = sadd.s32 %s69, 1
      %s71 = scalar_select %p68, %s69, %s70
      %p74 = pneg %p68
      %p75 = scmp.eq.s32.totalorder %s17, 1
      %p76 = por %p74, %p75
      %p77 = scmp.ne.s32.totalorder %s69, %s72
      %p78 = scmp.eq.s32.totalorder %s17, 0
      %p79 = por %p77, %p78
      %p80 = scmp.ne.s32.totalorder %s69, %s72
      %p81 = scmp.eq.s32.totalorder %s22, 1
      %p82 = por %p80, %p81
      %p83 = scmp.ne.s32.totalorder %s72, %s73
      %p84 = scmp.eq.s32.totalorder %s22, 0
      %p85 = por %p83, %p84
      %p86 = scmp.ne.s32.totalorder %s72, %s73
      %p87 = scmp.eq.s32.totalorder %s23, 1
      %p88 = por %p86, %p87
      %p90 = scmp.ne.s32.totalorder %s73, %s89
      %p91 = scmp.eq.s32.totalorder %s23, 0
      %p92 = por %p90, %p91
      %s93 = ssub.s32 %s24, %s36
      %p94 = scmp.eq.s32.totalorder %s93, 0
      %s96 = sadd.s32 %s95, 1
      %s97 = scalar_select %p94, %s95, %s96
      %p100 = pneg %p94
      %p101 = scmp.eq.s32.totalorder %s17, 1
      %p102 = por %p100, %p101
      %p103 = scmp.ne.s32.totalorder %s95, %s98
      %p104 = scmp.eq.s32.totalorder %s17, 0
      %p105 = por %p103, %p104
      %p106 = scmp.ne.s32.totalorder %s95, %s98
      %p107 = scmp.eq.s32.totalorder %s22, 1
      %p108 = por %p106, %p107
      %p109 = scmp.ne.s32.totalorder %s98, %s99
      %p110 = scmp.eq.s32.totalorder %s22, 0
      %p111 = por %p109, %p110
      %p112 = scmp.ne.s32.totalorder %s98, %s99
      %p113 = scmp.eq.s32.totalorder %s23, 1
      %p114 = por %p112, %p113
      %p116 = scmp.ne.s32.totalorder %s99, %s115
      %p117 = scmp.eq.s32.totalorder %s23, 0
      %p118 = por %p116, %p117
      %p119 = scmp.le.s32.totalorder 1, %s17
      %p120 = scmp.lt.s32.totalorder %s17, 3
      %p121 = pnand %p119, %p120
      %p122 = pneg %p121
      // Predicated region
      $region9: #{tpu_custom_call.1} parent=5 // pred_check
        _
      $region10: #{tpu_custom_call.1} parent=5 // pred_check_branch
        %124 = sbr.rel (%p121) target = $region12
      $region11: #{tpu_custom_call.1} parent=5 // pred_region
        %s125 = ssub.s32 %s17, 1
      $region12: #{tpu_custom_call.1} parent=5 // pred_fallthru
        _
      %p126 = scmp.lt.s32.totalorder %s17, 2
      // Predicated region
      $region13: #{tpu_custom_call.1} parent=5 // pred_check
        %p127 = pneg %p126
      $region14: #{tpu_custom_call.1} parent=5 // pred_check_branch
        %129 = sbr.rel (%p127) target = $region16
      $region15: #{tpu_custom_call.1} parent=5 // pred_region
        // Predicated region
        $region17: #{tpu_custom_call.1} parent=15 // pred_check
          %p130 = pneg %p51
        $region18: #{tpu_custom_call.1} parent=15 // pred_check_branch
          %132 = sbr.rel (%p130) target = $region20
        $region19: #{tpu_custom_call.1} parent=15 // pred_region
          %s133 = sand.u32 %s41, 1
          %s134 = scalar_lea.sflag [#allocation4], %s133
          %s135 = sand.u32 %s41, 1
          %s136 = smul.addr %s135, 8
          %s137 = scalar_lea.vmem [#allocation3], %s136
          %s138 = sadd.s32 %s24, %s25
          %s140 = ssub.s32 128, 128
          %141 = vsyncadd %s134, %s140
          %s142 = smul.addr %s138, 128
          %s143 = scalar_lea.hbm %s0, %s142
          %s145 = sshll.u32 %s137, 4
          %s146 = int_to_ptr.vmem [resolvable:$true] %s145
          %148 = dma.hbm_to_vmem [thread:$0]  %s143, 128, %s146, %s134
        $region20: #{tpu_custom_call.1} parent=15 // pred_fallthru
          _
        // Predicated region
        $region21: #{tpu_custom_call.1} parent=15 // pred_check
          %p149 = pneg %p79
        $region22: #{tpu_custom_call.1} parent=15 // pred_check_branch
          %151 = sbr.rel (%p149) target = $region24
        $region23: #{tpu_custom_call.1} parent=15 // pred_region
          %s152 = sand.u32 %s69, 1
          %s153 = scalar_lea.sflag [#allocation7], %s152
          %s154 = sand.u32 %s69, 1
          %s155 = smul.addr %s154, 8
          %s156 = scalar_lea.vmem [#allocation6], %s155
          %s157 = sadd.s32 %s24, %s25
          %s159 = ssub.s32 128, 128
          %160 = vsyncadd %s153, %s159
          %s161 = smul.addr %s157, 128
          %s162 = scalar_lea.hbm %s1, %s161
          %s164 = sshll.u32 %s156, 4
          %s165 = int_to_ptr.vmem [resolvable:$true] %s164
          %167 = dma.hbm_to_vmem [thread:$0]  %s162, 128, %s165, %s153
        $region24: #{tpu_custom_call.1} parent=15 // pred_fallthru
          _
      $region16: #{tpu_custom_call.1} parent=5 // pred_fallthru
        _
      %p168 = scmp.le.s32.totalorder 1, %s17
      %p169 = scmp.lt.s32.totalorder %s17, 3
      %p170 = pnand %p168, %p169
      %p171 = pneg %p170
      // Predicated region
      $region25: #{tpu_custom_call.1} parent=5 // pred_check
        _
      $region26: #{tpu_custom_call.1} parent=5 // pred_check_branch
        %173 = sbr.rel (%p170) target = $region28
      $region27: #{tpu_custom_call.1} parent=5 // pred_region
        %s174 = ssub.s32 %s17, 1
        %s175 = sand.u32 %s44, 1
        %s176 = scalar_lea.sflag [#allocation4], %s175
        %s177 = sand.u32 %s44, 1
        %s178 = smul.addr %s177, 8
        %s179 = scalar_lea.vmem [#allocation3], %s178
        // Predicated region
        $region29: #{tpu_custom_call.1} parent=27 // pred_check
          %p180 = pneg %p57
        $region30: #{tpu_custom_call.1} parent=27 // pred_check_branch
          %182 = sbr.rel (%p180) target = $region32
        $region31: #{tpu_custom_call.1} parent=27 // pred_region
          %183 = dma.done %s176, 128
        $region32: #{tpu_custom_call.1} parent=27 // pred_fallthru
          _
        %s184 = sand.u32 %s72, 1
        %s185 = scalar_lea.sflag [#allocation7], %s184
        %s186 = sand.u32 %s72, 1
        %s187 = smul.addr %s186, 8
        %s188 = scalar_lea.vmem [#allocation6], %s187
        // Predicated region
        $region33: #{tpu_custom_call.1} parent=27 // pred_check
          %p189 = pneg %p85
        $region34: #{tpu_custom_call.1} parent=27 // pred_check_branch
          %191 = sbr.rel (%p189) target = $region36
        $region35: #{tpu_custom_call.1} parent=27 // pred_region
          %192 = dma.done %s185, 128
        $region36: #{tpu_custom_call.1} parent=27 // pred_fallthru
          _
        %s193 = sand.u32 %s44, 1
        %s194 = scalar_lea.sflag [#allocation4], %s193
        %s195 = sand.u32 %s44, 1
        %s196 = smul.addr %s195, 8
        %s197 = scalar_lea.vmem [#allocation3], %s196
        %p198 = pneg %p57
        %p199 = pneg %p54
        %s200 = sand.u32 %s72, 1
        %s201 = scalar_lea.sflag [#allocation7], %s200
        %s202 = sand.u32 %s72, 1
        %s203 = smul.addr %s202, 8
        %s204 = scalar_lea.vmem [#allocation6], %s203
        %p205 = pneg %p85
        %p206 = pneg %p82
        %p207 = pneg %p111
        %p208 = pneg %p108
        %s209 = sand.u32 %s98, 1
        %s210 = scalar_lea.sflag [#allocation5], %s209
        %s211 = sand.u32 %s98, 1
        %s212 = smul.addr %s211, 8
        %s213 = scalar_lea.vmem [#allocation8], %s212
        %s214 = sadd.s32 %s26, %s27
        %s215 = sadd.s32 %s26, %s27
        %p216 = scmp.eq.s32.totalorder %s27, 0
        // Predicated region
        $region37: #{tpu_custom_call.1} parent=27 // pred_check
          %p217 = pneg %p216
        $region38: #{tpu_custom_call.1} parent=27 // pred_check_branch
          %219 = sbr.rel (%p217) target = $region40
        $region39: #{tpu_custom_call.1} parent=27 // pred_region
          %220 = vst [vmem:[#allocation2] sm:$0xff] 0.0
        $region40: #{tpu_custom_call.1} parent=27 // pred_fallthru
          _
        %v221 = vld [vmem:[%s179] sm:$0xff]
        %v222 = vld [vmem:[%s188] sm:$0xff]
        %v223 = vlog2.pop %v221
        %v224 = vmul.f32 %v223, 0.6931472
        %v225 = vmax.f32 %v224, -100.0
        %v226 = vsub.f32 1.0, %v221
        %v227 = vlog2.pop %v226
        %v228 = vmul.f32 %v227, 0.6931472
        %v229 = vmax.f32 %v228, -100.0
        %v230 = vsub.f32 %v225, %v229
        %v231 = vmul.f32 %v222, %v230
        %v232 = vadd.f32 %v229, %v231
        %v233 = vsub.f32 0.0, %v232
        %v234 = vld [vmem:[#allocation2] sm:$0xff]
        %v235 = vadd.f32 %v233, 0.0
        %v236 = vadd.f32 %v234, %v235
        %237 = vst [vmem:[#allocation2] sm:$0xff] %v236
        // Predicated region
        $region41: #{tpu_custom_call.1} parent=27 // pred_check
          %p238 = pneg %p216
        $region42: #{tpu_custom_call.1} parent=27 // pred_check_branch
          %240 = sbr.rel (%p238) target = $region44
        $region43: #{tpu_custom_call.1} parent=27 // pred_region
          %v241 = vld [vmem:[#allocation2] sm:$0xff]
          %242 = vst [vmem:[%s213] sm:$0xff] %v241
        $region44: #{tpu_custom_call.1} parent=27 // pred_fallthru
          _
        %s243 = sand.u32 %s98, 1
        %s244 = scalar_lea.sflag [#allocation5], %s243
        %s245 = sand.u32 %s98, 1
        %s246 = smul.addr %s245, 8
        %s247 = scalar_lea.vmem [#allocation8], %s246
        // Predicated region
        $region45: #{tpu_custom_call.1} parent=27 // pred_check
          %p248 = pneg %p108
        $region46: #{tpu_custom_call.1} parent=27 // pred_check_branch
          %250 = sbr.rel (%p248) target = $region48
        $region47: #{tpu_custom_call.1} parent=27 // pred_region
          %s252 = ssub.s32 128, 128
          %253 = vsyncadd %s244, %s252
          %s254 = smul.addr %s26, 128
          %s255 = scalar_lea.hbm %s2, %s254
          %s257 = sshll.u32 %s247, 4
          %s258 = int_to_ptr.vmem [resolvable:$true] %s257
          %260 = dma.vmem_to_hbm [thread:$0]  %s258, 128, %s255, %s244
        $region48: #{tpu_custom_call.1} parent=27 // pred_fallthru
          _
      $region28: #{tpu_custom_call.1} parent=5 // pred_fallthru
        _
      %p261 = scmp.le.s32.totalorder 2, %s17
      // Predicated region
      $region49: #{tpu_custom_call.1} parent=5 // pred_check
        %p262 = pneg %p261
      $region50: #{tpu_custom_call.1} parent=5 // pred_check_branch
        %264 = sbr.rel (%p262) target = $region52
      $region51: #{tpu_custom_call.1} parent=5 // pred_region
        %s265 = ssub.s32 %s17, 2
        // Predicated region
        $region53: #{tpu_custom_call.1} parent=51 // pred_check
          %p266 = pneg %p114
        $region54: #{tpu_custom_call.1} parent=51 // pred_check_branch
          %268 = sbr.rel (%p266) target = $region56
        $region55: #{tpu_custom_call.1} parent=51 // pred_region
          %s269 = sand.u32 %s99, 1
          %s270 = scalar_lea.sflag [#allocation5], %s269
          %s271 = sand.u32 %s99, 1
          %s272 = smul.addr %s271, 8
          %s273 = scalar_lea.vmem [#allocation8], %s272
          %274 = dma.done %s270, 128
        $region56: #{tpu_custom_call.1} parent=51 // pred_fallthru
          _
      $region52: #{tpu_custom_call.1} parent=5 // pred_fallthru
        _
    $region6: #{tpu_custom_call.1} parent=1 // loop_footer
      %s21 = sadd.s32 1, %s17
    $region7: #{tpu_custom_call.1} parent=1 // loop_footer_branch
      %16 = sbr.rel target = $region3
    $region8: #{tpu_custom_call.1} parent=1 // loop_exit
      _
    %275 = vsyncpa [#allocation4], 1
    %s276 = scalar_lea.sflag [#allocation4], 1
    %277 = vsyncpa %s276, 1
    %278 = vsyncpa [#allocation7], 1
    %s279 = scalar_lea.sflag [#allocation7], 1
    %280 = vsyncpa %s279, 1
    %281 = vsyncpa [#allocation5], 1
    %s282 = scalar_lea.sflag [#allocation5], 1
    %283 = vsyncpa %s282, 1

</llo_original>
